<compile_context>
chip_gen: v7x
topology: tpu7x:2x2x1
jax: 0.10.0
libtpu: 0.0.40
codegen_flags: <defaults>
</compile_context>

<pallas_src>
import jax
import jax.numpy as jnp
from jax.experimental import pallas as pl
from jax.experimental.pallas import tpu as pltpu


def _round_up(n, m):
    return ((n + m - 1) // m) * m


def _decoder_kernel(x_ref, w1p_ref, b1p_ref, w2p_ref, b2_ref, o_ref):
    # x_ref  : (tr, pack*S) f32   -- `pack` batch rows per sublane row (lane-dense)
    # w1p_ref: (pack*S, pack*H) bf16 -- block-diagonal fc1 weight (pack copies of W1)
    # b1p_ref: (1, pack*H)      f32
    # w2p_ref: (pack*H, pack)   bf16 -- block-diagonal fc2 weight
    # b2_ref : (1,)             f32  -- SMEM scalar
    # o_ref  : (tr, pack)       f32
    xb = x_ref[...].astype(jnp.bfloat16)
    h = jnp.dot(xb, w1p_ref[...], preferred_element_type=jnp.float32)  # (tr, pack*H)
    h = jnp.maximum(h + b1p_ref[...], 0.0)                             # bias + ReLU
    y = jnp.dot(h.astype(jnp.bfloat16), w2p_ref[...],
                preferred_element_type=jnp.float32)                    # (tr, pack)
    o_ref[...] = y + b2_ref[0]


def epoct_scalar_decoder(x, w1, b1, w2, b2, *, tb=None):
    """Forward pass of EpoctScalarDecoder.

    x : (B, S) float32
    w1: (S, H) float32   (== fc1.weight.T)
    b1: (H,)  float32
    w2: (H, 1) float32   (== fc2.weight.T)
    b2: scalar / (1,) float32
    returns (B, 1) float32
    """
    B, S = x.shape
    H = w1.shape[1]

    # Pack `pack` batch rows into one 128-lane row (metadata-only reshape of the
    # contiguous (B, S) array) so x blocks are lane-dense in VMEM.
    pack = 128 // S if (S <= 128 and 128 % S == 0) else 1
    quantum = pack * 128          # batch-row quantum: keeps every tile (8,128)-aligned

    # ---- pick batch tile / grid --------------------------------------------
    B_q = _round_up(B, quantum)
    if tb is None:
        TB_TARGET = 16384                      # ~2 MB of f32 x per grid step
        g = -(-B_q // TB_TARGET)               # cdiv
        if g == 1 and B_q > 4096:
            g = 2                              # keep both v7x TensorCores busy
        tb = _round_up(-(-B_q // g), quantum)
    else:
        tb = max(quantum, _round_up(min(tb, B_q), quantum))
    B_pad = _round_up(B_q, tb)
    grid = (B_pad // tb,)
    tr = tb // pack                            # packed rows per tile

    # ---- operand prep (everything tiny except an optional pad of x) --------
    xf = x.astype(jnp.float32)
    if B_pad != B:
        # TODO(synk): a producer that already supplies a 512-row-aligned (ideally
        # bf16) batch avoids this extra pad pass over x entirely.
        xf = jnp.pad(xf, ((0, B_pad - B), (0, 0)))
    xp = xf.reshape(B_pad // pack, pack * S)   # metadata-only reshape (lane-dense)

    eye = jnp.eye(pack, dtype=jnp.float32)
    w1f = jnp.asarray(w1, jnp.float32).reshape(S, H)
    w2f = jnp.asarray(w2, jnp.float32).reshape(H, 1)
    w1p = jnp.kron(eye, w1f).astype(jnp.bfloat16)          # (pack*S, pack*H)
    w2p = jnp.kron(eye, w2f).astype(jnp.bfloat16)          # (pack*H, pack)
    b1p = jnp.tile(jnp.asarray(b1, jnp.float32).reshape(1, H), (1, pack))
    b2s = jnp.asarray(b2, jnp.float32).reshape(1,)

    flops = 2 * B_pad * (S * H + H)
    bytes_accessed = B_pad * S * 4 + B_pad * 4 + w1p.size * 2 + w2p.size * 2

    out = pl.pallas_call(
        _decoder_kernel,
        out_shape=jax.ShapeDtypeStruct((B_pad // pack, pack), jnp.float32),
        grid_spec=pltpu.PrefetchScalarGridSpec(
            num_scalar_prefetch=0,
            grid=grid,
            in_specs=[
                pl.BlockSpec((tr, pack * S), lambda i: (i, 0)),      # x tile (lane-dense)
                pl.BlockSpec((pack * S, pack * H), lambda i: (0, 0)),  # packed fc1 W
                pl.BlockSpec((1, pack * H), lambda i: (0, 0)),         # packed fc1 b
                pl.BlockSpec((pack * H, pack), lambda i: (0, 0)),      # packed fc2 W
                pl.BlockSpec(memory_space=pltpu.MemorySpace.SMEM),     # fc2 bias scalar
            ],
            out_specs=pl.BlockSpec((tr, pack), lambda i: (i, 0)),
        ),
        compiler_params=pltpu.CompilerParams(
            dimension_semantics=("parallel",),
            vmem_limit_bytes=32 * 1024 * 1024,
        ),
        cost_estimate=pl.CostEstimate(
            flops=flops, transcendentals=0, bytes_accessed=bytes_accessed),
    )(xp, w1p, b1p, w2p, b2s)

    y = out.reshape(B_pad, 1)                  # metadata-only
    return y if B_pad == B else y[:B]          # slice only when padding was needed


def _reference(x, w1, b1, w2, b2):
    # Same arithmetic the kernel performs: bf16 MXU operands, f32 accumulation.
    hi = jax.lax.Precision.HIGHEST
    f32 = jnp.float32
    xb = x.astype(jnp.bfloat16).astype(f32)
    w1b = jnp.asarray(w1, f32).astype(jnp.bfloat16).astype(f32)
    h = jnp.maximum(jnp.matmul(xb, w1b, precision=hi)
                    + jnp.reshape(jnp.asarray(b1, f32), (1, -1)), 0.0)
    hb = h.astype(jnp.bfloat16).astype(f32)
    w2b = jnp.asarray(w2, f32).reshape(-1, 1).astype(jnp.bfloat16).astype(f32)
    return jnp.matmul(hb, w2b, precision=hi) + jnp.reshape(jnp.asarray(b2, f32), (1, 1))


if __name__ == "__main__":
    # Small shapes consistent with the module: batch=16, STATE_SIZE=32, hidden=10.
    B, STATE_SIZE, HIDDEN = 16, 32, 10

    key = jax.random.PRNGKey(0)
    kx, kw1, kb1, kw2, kb2 = jax.random.split(key, 5)

    x = jax.random.normal(kx, (B, STATE_SIZE), dtype=jnp.float32)

    # Deterministic PyTorch-style init: U(-1/sqrt(fan_in), 1/sqrt(fan_in)).
    bound1 = 1.0 / (STATE_SIZE ** 0.5)
    w1 = jax.random.uniform(kw1, (STATE_SIZE, HIDDEN), jnp.float32, -bound1, bound1)
    b1 = jax.random.uniform(kb1, (HIDDEN,), jnp.float32, -bound1, bound1)
    bound2 = 1.0 / (HIDDEN ** 0.5)
    w2 = jax.random.uniform(kw2, (HIDDEN, 1), jnp.float32, -bound2, bound2)
    b2 = jax.random.uniform(kb2, (1,), jnp.float32, -bound2, bound2)

    # 1) Small batch (single tile, heavy padding path).
    out = jax.block_until_ready(epoct_scalar_decoder(x, w1, b1, w2, b2))
    ref = _reference(x, w1, b1, w2, b2)
    assert out.shape == (B, 1), out.shape
    assert jnp.allclose(out, ref, atol=1e-2, rtol=1e-2), (
        f"mismatch vs reference: max err {float(jnp.max(jnp.abs(out - ref)))}")

    # 2) Batch that is not a multiple of the 512-row quantum.
    B2 = 300
    x2 = jax.random.normal(jax.random.PRNGKey(1), (B2, STATE_SIZE), jnp.float32)
    out2 = jax.block_until_ready(epoct_scalar_decoder(x2, w1, b1, w2, b2))
    ref2 = _reference(x2, w1, b1, w2, b2)
    assert out2.shape == (B2, 1), out2.shape
    assert jnp.allclose(out2, ref2, atol=1e-2, rtol=1e-2), (
        f"padded mismatch: max err {float(jnp.max(jnp.abs(out2 - ref2)))}")

    # 3) Multi-step grid with an explicit small tile (exercises tiling + padding
    #    + the parallel grid dimension).
    B3 = 1500
    x3 = jax.random.normal(jax.random.PRNGKey(2), (B3, STATE_SIZE), jnp.float32)
    out3 = jax.block_until_ready(epoct_scalar_decoder(x3, w1, b1, w2, b2, tb=512))
    ref3 = _reference(x3, w1, b1, w2, b2)
    assert out3.shape == (B3, 1), out3.shape
    assert jnp.allclose(out3, ref3, atol=1e-2, rtol=1e-2), (
        f"tiled mismatch: max err {float(jnp.max(jnp.abs(out3 - ref3)))}")

    print("KERNEL_OK")
</pallas_src>

<mosaic_0001>
module attributes {stable_mosaic.version = 11 : i64} {
  func.func @_decoder_kernel(%arg0: i32, %arg1: memref<128x128xf32, #tpu.memory_space<vmem>>, %arg2: memref<128x40xbf16, #tpu.memory_space<vmem>>, %arg3: memref<1x40xf32, #tpu.memory_space<vmem>>, %arg4: memref<40x4xbf16, #tpu.memory_space<vmem>>, %arg5: memref<1xf32, #tpu.memory_space<smem>>, %arg6: memref<128x4xf32, #tpu.memory_space<vmem>>) attributes {dimension_semantics = [#tpu.dimension_semantics<parallel>], iteration_bounds = array<i64: 1>, scalar_prefetch = 0 : i64, scratch_operands = 0 : i64, tpu.core_type = #tpu.core_type<tc>, window_params = [{transform_indices = @transform_0, window_bounds = array<i64: 128, 128>}, {pipeline_mode = #tpu.pipeline_mode<synchronous>, transform_indices = @transform_1, window_bounds = array<i64: 128, 40>}, {pipeline_mode = #tpu.pipeline_mode<synchronous>, transform_indices = @transform_2, window_bounds = array<i64: 1, 40>}, {pipeline_mode = #tpu.pipeline_mode<synchronous>, transform_indices = @transform_3, window_bounds = array<i64: 40, 4>}, {transform_indices = @transform_4, window_bounds = array<i64: 1>}, {transform_indices = @transform_5, window_bounds = array<i64: 128, 4>}]} {
    %c0 = arith.constant 0 : index
    %c0_0 = arith.constant 0 : index
    %0 = vector.load %arg1[%c0, %c0_0] : memref<128x128xf32, #tpu.memory_space<vmem>>, vector<128x128xf32>
    %1 = arith.truncf %0 : vector<128x128xf32> to vector<128x128xbf16>
    %c0_1 = arith.constant 0 : index
    %c0_2 = arith.constant 0 : index
    %2 = vector.load %arg2[%c0_1, %c0_2] : memref<128x40xbf16, #tpu.memory_space<vmem>>, vector<128x40xbf16>
    %cst = arith.constant dense<0.000000e+00> : vector<128x40xf32>
    %3 = tpu.matmul %1, %2, %cst {dimension_numbers = #tpu.dot_dimension_numbers<[1], [0], [0], [1], [0, 0, 1, 1], [], []>} : vector<128x128xbf16>, vector<128x40xbf16>, vector<128x40xf32> -> vector<128x40xf32>
    %c0_3 = arith.constant 0 : index
    %c0_4 = arith.constant 0 : index
    %4 = vector.load %arg3[%c0_3, %c0_4] : memref<1x40xf32, #tpu.memory_space<vmem>>, vector<1x40xf32>
    %5 = vector.broadcast %4 : vector<1x40xf32> to vector<128x40xf32>
    %6 = arith.addf %3, %5 : vector<128x40xf32>
    %cst_5 = arith.constant 0.000000e+00 : f32
    %7 = vector.broadcast %cst_5 : f32 to vector<128x40xf32>
    %8 = arith.maximumf %6, %7 : vector<128x40xf32>
    %9 = arith.truncf %8 : vector<128x40xf32> to vector<128x40xbf16>
    %c0_6 = arith.constant 0 : index
    %c0_7 = arith.constant 0 : index
    %10 = vector.load %arg4[%c0_6, %c0_7] : memref<40x4xbf16, #tpu.memory_space<vmem>>, vector<40x4xbf16>
    %cst_8 = arith.constant dense<0.000000e+00> : vector<128x4xf32>
    %11 = tpu.matmul %9, %10, %cst_8 {dimension_numbers = #tpu.dot_dimension_numbers<[1], [0], [0], [1], [0, 0, 1, 1], [], []>} : vector<128x40xbf16>, vector<40x4xbf16>, vector<128x4xf32> -> vector<128x4xf32>
    %c0_9 = arith.constant 0 : index
    %12 = memref.load %arg5[%c0_9] : memref<1xf32, #tpu.memory_space<smem>>
    %13 = vector.broadcast %12 : f32 to vector<128x4xf32>
    %14 = arith.addf %11, %13 : vector<128x4xf32>
    %c0_10 = arith.constant 0 : index
    %c0_11 = arith.constant 0 : index
    %15 = vector.load %arg6[%c0_10, %c0_11] : memref<128x4xf32, #tpu.memory_space<vmem>>, vector<128x4xf32>
    tpu.vector_store %arg6[%c0_10, %c0_11], %14 {strides = array<i32>} : memref<128x4xf32, #tpu.memory_space<vmem>>, vector<128x4xf32>,
    return
  }
  func.func @transform_0(%arg0: i32) -> (i32, i32) {
    %c0_i32 = arith.constant 0 : i32
    %c0_i32_0 = arith.constant 0 : i32
    return %arg0, %c0_i32 : i32, i32
  }
  func.func @transform_1(%arg0: i32) -> (i32, i32) {
    %c0_i32 = arith.constant 0 : i32
    %c0_i32_0 = arith.constant 0 : i32
    %c0_i32_1 = arith.constant 0 : i32
    return %c0_i32, %c0_i32_0 : i32, i32
  }
  func.func @transform_2(%arg0: i32) -> (i32, i32) {
    %c0_i32 = arith.constant 0 : i32
    %c0_i32_0 = arith.constant 0 : i32
    %c0_i32_1 = arith.constant 0 : i32
    return %c0_i32, %c0_i32_0 : i32, i32
  }
  func.func @transform_3(%arg0: i32) -> (i32, i32) {
    %c0_i32 = arith.constant 0 : i32
    %c0_i32_0 = arith.constant 0 : i32
    %c0_i32_1 = arith.constant 0 : i32
    return %c0_i32, %c0_i32_0 : i32, i32
  }
  func.func @transform_4(%arg0: i32) -> i32 {
    %c0_i32 = arith.constant 0 : i32
    %c0_i32_0 = arith.constant 0 : i32
    return %c0_i32 : i32
  }
  func.func @transform_5(%arg0: i32) -> (i32, i32) {
    %c0_i32 = arith.constant 0 : i32
    %c0_i32_0 = arith.constant 0 : i32
    return %arg0, %c0_i32 : i32, i32
  }
}

</mosaic_0001>

<llo_original>
// kernel: tpu_custom_call.1
$region0: #{tpu_custom_call.1}
  #allocation0 [shape = 'u32[]', space=smem, size = 0x4, offset = 0x4, fixed_abs, tag = 'smem constant byte address 0x4 - core index']
  #allocation1 [shape = 'u32[144,128]{1,0:T(1,128)}', space=vmem, size = 0x12000, scoped, tag = 'internal scratch']
  #allocation2 [shape = 'f32[1]{0:T(128)S(6)}', space=smem, size = 0x200, scoped, tag = 'scoped memory for tpu_custom_call.1']
  %s0 = inlined_call_operand.hbm [shape: f32[128,128], index: 0, kind: input, shape index: {}]
  %s1 = inlined_call_operand.vmem [shape: bf16[128,40], index: 1, kind: input, shape index: {}]
  %s2 = inlined_call_operand.vmem [shape: f32[1,40], index: 2, kind: input, shape index: {}]
  %s3 = inlined_call_operand.vmem [shape: bf16[40,4], index: 3, kind: input, shape index: {}]
  %s4 = inlined_call_operand.<no memory space> [shape: f32[1], index: 4, kind: input, shape index: {}]
  %s5 = inlined_call_operand.vmem [shape: f32[128,4], index: 5, kind: output, shape index: {}]
  %s6 = sld [smem:[#allocation0]]
  $region34: #{tpu_custom_call.1} parent=0
    _
  %s8 = ssub.s32 1, %s6
  %s9 = scalar_select 0, %s8, %s6
  %10 = sst [smem:[#allocation2]] %s4
  $region1: #{tpu_custom_call.1} parent=0
    #allocation3 [shape = 'u8[65536]{0}', space=vmem, size = 0x10000, scoped, tag = 'input window, operand 0, single buffered']
    #allocation4 [shape = 's32[1]{0}', space=sflag, size = 0x4, scoped, tag = 'scoped memory for tpu_custom_call.1']
    %11 = vsyncpa [#allocation4], 0
    // Predicated region
    $region2: #{tpu_custom_call.1} parent=1 // pred_check
      _
    $region3: #{tpu_custom_call.1} parent=1 // pred_check_branch
      %13 = sbr.rel (0) target = $region5
    $region4: #{tpu_custom_call.1} parent=1 // pred_region
      %s15 = ssub.s32 2048, 2048
      %16 = vsyncadd [#allocation4], %s15
      %s17 = sshll.u32 [#allocation3], 4
      %s18 = int_to_ptr.vmem [resolvable:$true] %s17
      %23 = dma.hbm_to_vmem [thread:$0]  %s0, 2048, %s18, [#allocation4], 128, 128, 8
    $region5: #{tpu_custom_call.1} parent=1 // pred_fallthru
      _
    // Predicated region
    $region6: #{tpu_custom_call.1} parent=1 // pred_check
      _
    $region7: #{tpu_custom_call.1} parent=1 // pred_check_branch
      %25 = sbr.rel (0) target = $region9
    $region8: #{tpu_custom_call.1} parent=1 // pred_region
      _
    $region9: #{tpu_custom_call.1} parent=1 // pred_fallthru
      _
    // Predicated region
    $region10: #{tpu_custom_call.1} parent=1 // pred_check
      _
    $region11: #{tpu_custom_call.1} parent=1 // pred_check_branch
      %27 = sbr.rel (0) target = $region13
    $region12: #{tpu_custom_call.1} parent=1 // pred_region
      _
    $region13: #{tpu_custom_call.1} parent=1 // pred_fallthru
      _
    // Predicated region
    $region14: #{tpu_custom_call.1} parent=1 // pred_check
      _
    $region15: #{tpu_custom_call.1} parent=1 // pred_check_branch
      %29 = sbr.rel (0) target = $region17
    $region16: #{tpu_custom_call.1} parent=1 // pred_region
      _
    $region17: #{tpu_custom_call.1} parent=1 // pred_fallthru
      _
    // Predicated region
    $region18: #{tpu_custom_call.1} parent=1 // pred_check
      _
    $region19: #{tpu_custom_call.1} parent=1 // pred_check_branch
      %31 = sbr.rel (0) target = $region21
    $region20: #{tpu_custom_call.1} parent=1 // pred_region
      _
    $region21: #{tpu_custom_call.1} parent=1 // pred_fallthru
      _
    // Predicated region
    $region22: #{tpu_custom_call.1} parent=1 // pred_check
      _
    $region23: #{tpu_custom_call.1} parent=1 // pred_check_branch
      %33 = sbr.rel (0) target = $region25
    $region24: #{tpu_custom_call.1} parent=1 // pred_region
      %34 = dma.done [#allocation4], 2048
    $region25: #{tpu_custom_call.1} parent=1 // pred_fallthru
      _
    %v36 = vld [vmem:[#allocation3] sm:$0xff]
    %v37 = vld [vmem:[#allocation3 + $0x8] sm:$0xff]
    %v38 = vld [vmem:[#allocation3 + $0x10] sm:$0xff]
    %v39 = vld [vmem:[#allocation3 + $0x18] sm:$0xff]
    %v40 = vld [vmem:[#allocation3 + $0x20] sm:$0xff]
    %v41 = vld [vmem:[#allocation3 + $0x28] sm:$0xff]
    %v42 = vld [vmem:[#allocation3 + $0x30] sm:$0xff]
    %v43 = vld [vmem:[#allocation3 + $0x38] sm:$0xff]
    %v44 = vld [vmem:[#allocation3 + $0x40] sm:$0xff]
    %v45 = vld [vmem:[#allocation3 + $0x48] sm:$0xff]
    %v46 = vld [vmem:[#allocation3 + $0x50] sm:$0xff]
    %v47 = vld [vmem:[#allocation3 + $0x58] sm:$0xff]
    %v48 = vld [vmem:[#allocation3 + $0x60] sm:$0xff]
    %v49 = vld [vmem:[#allocation3 + $0x68] sm:$0xff]
    %v50 = vld [vmem:[#allocation3 + $0x70] sm:$0xff]
    %v51 = vld [vmem:[#allocation3 + $0x78] sm:$0xff]
    %v52 = vpack.c.bf16 %v37, %v36
    %v53 = vpack.c.bf16 %v39, %v38
    %v54 = vpack.c.bf16 %v41, %v40
    %v55 = vpack.c.bf16 %v43, %v42
    %v56 = vpack.c.bf16 %v45, %v44
    %v57 = vpack.c.bf16 %v47, %v46
    %v58 = vpack.c.bf16 %v49, %v48
    %v59 = vpack.c.bf16 %v51, %v50
    %v60 = vld [vmem:[%s1] sm:$0xf]
    %v61 = vld [vmem:[%s1 + $0x4] sm:$0xf]
    %v62 = vld [vmem:[%s1 + $0x8] sm:$0xf]
    %v63 = vld [vmem:[%s1 + $0xc] sm:$0xf]
    %v64 = vld [vmem:[%s1 + $0x10] sm:$0xf]
    %v65 = vld [vmem:[%s1 + $0x14] sm:$0xf]
    %v66 = vld [vmem:[%s1 + $0x18] sm:$0xf]
    %v67 = vld [vmem:[%s1 + $0x1c] sm:$0xf]
    %v68 = vld [vmem:[%s1 + $0x20] sm:$0xf]
    %v69 = vld [vmem:[%s1 + $0x24] sm:$0xf]
    %v70 = vld [vmem:[%s1 + $0x28] sm:$0xf]
    %v71 = vld [vmem:[%s1 + $0x2c] sm:$0xf]
    %v72 = vld [vmem:[%s1 + $0x30] sm:$0xf]
    %v73 = vld [vmem:[%s1 + $0x34] sm:$0xf]
    %v74 = vld [vmem:[%s1 + $0x38] sm:$0xf]
    %v75 = vld [vmem:[%s1 + $0x3c] sm:$0xf]
    %v76 = vld [vmem:[%s2] sm:$0x1]
    %v78 = vlaneseq
    %v79 = vshrl.u32 %v78, 7
    %v80 = vsub.s32 0, %v79
    %v81 = vrot.slane %v76, %v80
    %v99 = vunpack.c.l.b16 %v60
    %v100 = vunpack.c.l.b16 %v61
    %v101 = vunpack.c.l.b16 %v62
    %v102 = vunpack.c.l.b16 %v63
    %v103 = vunpack.c.l.b16 %v64
    %v104 = vunpack.c.l.b16 %v65
    %v105 = vunpack.c.l.b16 %v66
    %v106 = vunpack.c.l.b16 %v67
    %v107 = vunpack.c.l.b16 %v68
    %v108 = vunpack.c.l.b16 %v69
    %v109 = vunpack.c.l.b16 %v70
    %v110 = vunpack.c.l.b16 %v71
    %v111 = vunpack.c.l.b16 %v72
    %v112 = vunpack.c.l.b16 %v73
    %v113 = vunpack.c.l.b16 %v74
    %v114 = vunpack.c.l.b16 %v75
    %v115 = vpack.c.b16 %v100, %v99
    %v116 = vpack.c.b16 %v102, %v101
    %v117 = vpack.c.b16 %v104, %v103
    %v118 = vpack.c.b16 %v106, %v105
    %v119 = vpack.c.b16 %v108, %v107
    %v120 = vpack.c.b16 %v110, %v109
    %v121 = vpack.c.b16 %v112, %v111
    %v122 = vpack.c.b16 %v114, %v113
    %131 = vmatprep.subr.bf16.mxu0 0
    %132 = vmatpush1.bf16.msra.mxu0 %v115
    %133 = vmatprep.subr.bf16.mxu0 0
    %134 = vmatpush1.bf16.msra.mxu0 %v116
    %135 = vmatprep.subr.bf16.mxu0 0
    %136 = vmatpush1.bf16.msra.mxu0 %v117
    %137 = vmatprep.subr.bf16.mxu0 0
    %138 = vmatpush1.bf16.msra.mxu0 %v118
    %139 = vmatprep.subr.bf16.mxu0 0
    %140 = vmatpush1.bf16.msra.mxu0 %v119
    %141 = vmatprep.subr.bf16.mxu0 0
    %142 = vmatpush1.bf16.msra.mxu0 %v120
    %143 = vmatprep.subr.bf16.mxu0 0
    %144 = vmatpush1.bf16.msra.mxu0 %v121
    %145 = vmatprep.subr.bf16.mxu0 0
    %146 = vmatpush1.bf16.msra.mxu0 %v122
    %147 = vmatprep.subr.bf16.mxu0 0
    %148 = vmatpush1.bf16.msra.mxu0 0
    %149 = vmatprep.subr.bf16.mxu0 0
    %150 = vmatpush1.bf16.msra.mxu0 0
    %151 = vmatprep.subr.bf16.mxu0 0
    %152 = vmatpush1.bf16.msra.mxu0 0
    %153 = vmatprep.subr.bf16.mxu0 0
    %154 = vmatpush1.bf16.msra.mxu0 0
    %155 = vmatprep.subr.bf16.mxu0 0
    %156 = vmatpush1.bf16.msra.mxu0 0
    %157 = vmatprep.subr.bf16.mxu0 0
    %158 = vmatpush1.bf16.msra.mxu0 0
    %159 = vmatprep.subr.bf16.mxu0 0
    %160 = vmatpush1.bf16.msra.mxu0 0
    %161 = vmatprep.subr.bf16.mxu0 0
    %162 = vmatpush1.bf16.msra.mxu0 0
    %163 = vmatprep.mubr.bf16.mxu0 0
    %164 = vmatmul.mubr.bf16.gmra.mrb[0].mxu0 %v52
    %v165 = vpop.f32.mrb[0].mxu0
    %v166 = vadd.f32 %v81, %v165
    %v167 = vpop.f32.mrb[0].mxu0
    %v168 = vpop.f32.mrb[0].mxu0
    %v169 = vadd.f32 %v81, %v168
    %v170 = vpop.f32.mrb[0].mxu0
    %171 = vmatprep.mubr.bf16.mxu0 0
    %172 = vmatmul.mubr.bf16.gmra.mrb[0].mxu0 %v53
    %v173 = vpop.f32.mrb[0].mxu0
    %v174 = vadd.f32 %v81, %v173
    %v175 = vpop.f32.mrb[0].mxu0
    %v176 = vpop.f32.mrb[0].mxu0
    %v177 = vadd.f32 %v81, %v176
    %v178 = vpop.f32.mrb[0].mxu0
    %179 = vmatprep.mubr.bf16.mxu0 0
    %180 = vmatmul.mubr.bf16.gmra.mrb[0].mxu0 %v54
    %v181 = vpop.f32.mrb[0].mxu0
    %v182 = vadd.f32 %v81, %v181
    %v183 = vpop.f32.mrb[0].mxu0
    %v184 = vpop.f32.mrb[0].mxu0
    %v185 = vadd.f32 %v81, %v184
    %v186 = vpop.f32.mrb[0].mxu0
    %187 = vmatprep.mubr.bf16.mxu0 0
    %188 = vmatmul.mubr.bf16.gmra.mrb[0].mxu0 %v55
    %v189 = vpop.f32.mrb[0].mxu0
    %v190 = vadd.f32 %v81, %v189
    %v191 = vpop.f32.mrb[0].mxu0
    %v192 = vpop.f32.mrb[0].mxu0
    %v193 = vadd.f32 %v81, %v192
    %v194 = vpop.f32.mrb[0].mxu0
    %195 = vmatprep.mubr.bf16.mxu0 0
    %196 = vmatmul.mubr.bf16.gmra.mrb[0].mxu0 %v56
    %v197 = vpop.f32.mrb[0].mxu0
    %v198 = vadd.f32 %v81, %v197
    %v199 = vpop.f32.mrb[0].mxu0
    %v200 = vpop.f32.mrb[0].mxu0
    %v201 = vadd.f32 %v81, %v200
    %v202 = vpop.f32.mrb[0].mxu0
    %203 = vmatprep.mubr.bf16.mxu0 0
    %204 = vmatmul.mubr.bf16.gmra.mrb[0].mxu0 %v57
    %v205 = vpop.f32.mrb[0].mxu0
    %v206 = vadd.f32 %v81, %v205
    %v207 = vpop.f32.mrb[0].mxu0
    %v208 = vpop.f32.mrb[0].mxu0
    %v209 = vadd.f32 %v81, %v208
    %v210 = vpop.f32.mrb[0].mxu0
    %211 = vmatprep.mubr.bf16.mxu0 0
    %212 = vmatmul.mubr.bf16.gmra.mrb[0].mxu0 %v58
    %v213 = vpop.f32.mrb[0].mxu0
    %v214 = vadd.f32 %v81, %v213
    %v215 = vpop.f32.mrb[0].mxu0
    %v216 = vpop.f32.mrb[0].mxu0
    %v217 = vadd.f32 %v81, %v216
    %v218 = vpop.f32.mrb[0].mxu0
    %219 = vmatprep.mubr.bf16.mxu0 0
    %220 = vmatmul.mubr.bf16.gmra.mrb[0].mxu0 %v59
    %v221 = vpop.f32.mrb[0].mxu0
    %v222 = vadd.f32 %v81, %v221
    %v223 = vpop.f32.mrb[0].mxu0
    %v224 = vpop.f32.mrb[0].mxu0
    %v225 = vadd.f32 %v81, %v224
    %v226 = vpop.f32.mrb[0].mxu0
    %227 = vdwg.mxu0
    %v228 = vmax.f32 %v166, 0.0
    %v229 = vmax.f32 %v169, 0.0
    %v230 = vmax.f32 %v174, 0.0
    %v231 = vmax.f32 %v177, 0.0
    %v232 = vmax.f32 %v182, 0.0
    %v233 = vmax.f32 %v185, 0.0
    %v234 = vmax.f32 %v190, 0.0
    %v235 = vmax.f32 %v193, 0.0
    %v236 = vmax.f32 %v198, 0.0
    %v237 = vmax.f32 %v201, 0.0
    %v238 = vmax.f32 %v206, 0.0
    %v239 = vmax.f32 %v209, 0.0
    %v240 = vmax.f32 %v214, 0.0
    %v241 = vmax.f32 %v217, 0.0
    %v242 = vmax.f32 %v222, 0.0
    %v243 = vmax.f32 %v225, 0.0
    %v244 = vpack.c.bf16 %v229, %v228
    %v245 = vpack.c.bf16 %v231, %v230
    %v246 = vpack.c.bf16 %v233, %v232
    %v247 = vpack.c.bf16 %v235, %v234
    %v248 = vpack.c.bf16 %v237, %v236
    %v249 = vpack.c.bf16 %v239, %v238
    %v250 = vpack.c.bf16 %v241, %v240
    %v251 = vpack.c.bf16 %v243, %v242
    %v252 = vld [vmem:[%s3] sm:$0xf]
    %v253 = vld [vmem:[%s3 + $0x4] sm:$0xf]
    %v254 = vld [vmem:[%s3 + $0x8] sm:$0xf]
    %v255 = vld [vmem:[%s3 + $0xc] sm:$0xf]
    %v256 = vld [vmem:[%s3 + $0x10] sm:$0xf]
    %s257 = sld [smem:[#allocation2]]
    %v258 = vstv %s257
    %v264 = vunpack.c.l.b16 %v252
    %v265 = vunpack.c.l.b16 %v253
    %v266 = vunpack.c.l.b16 %v254
    %v267 = vunpack.c.l.b16 %v255
    %v268 = vunpack.c.l.b16 %v256
    %v269 = vpack.c.b16 %v265, %v264
    %v270 = vpack.c.b16 %v267, %v266
    %v271 = vpack.c.b16 %v268, %v268
    %vm274 = vcmask 326656
    %v276 = vsel %vm274, %v244, 0
    %v279 = vsel %vm274, %v245, 0
    %v282 = vsel %vm274, %v246, 0
    %v285 = vsel %vm274, %v247, 0
    %v288 = vsel %vm274, %v248, 0
    %v291 = vsel %vm274, %v249, 0
    %v294 = vsel %vm274, %v250, 0
    %v297 = vsel %vm274, %v251, 0
    %vm299 = vcmask 1043456
    %v301 = vsel %vm299, %v271, 0
    %303 = vmatprep.subr.bf16.mxu0 0
    %304 = vmatpush1.bf16.msra.mxu0 %v269
    %305 = vmatprep.subr.bf16.mxu0 0
    %306 = vmatpush1.bf16.msra.mxu0 %v270
    %307 = vmatprep.subr.bf16.mxu0 0
    %308 = vmatpush1.bf16.msra.mxu0 %v301
    %309 = vmatprep.subr.bf16.mxu0 0
    %310 = vmatpush1.bf16.msra.mxu0 0
    %311 = vmatprep.subr.bf16.mxu0 0
    %312 = vmatpush1.bf16.msra.mxu0 0
    %313 = vmatprep.subr.bf16.mxu0 0
    %314 = vmatpush1.bf16.msra.mxu0 0
    %315 = vmatprep.subr.bf16.mxu0 0
    %316 = vmatpush1.bf16.msra.mxu0 0
    %317 = vmatprep.subr.bf16.mxu0 0
    %318 = vmatpush1.bf16.msra.mxu0 0
    %319 = vmatprep.subr.bf16.mxu0 0
    %320 = vmatpush1.bf16.msra.mxu0 0
    %321 = vmatprep.subr.bf16.mxu0 0
    %322 = vmatpush1.bf16.msra.mxu0 0
    %323 = vmatprep.subr.bf16.mxu0 0
    %324 = vmatpush1.bf16.msra.mxu0 0
    %325 = vmatprep.subr.bf16.mxu0 0
    %326 = vmatpush1.bf16.msra.mxu0 0
    %327 = vmatprep.subr.bf16.mxu0 0
    %328 = vmatpush1.bf16.msra.mxu0 0
    %329 = vmatprep.subr.bf16.mxu0 0
    %330 = vmatpush1.bf16.msra.mxu0 0
    %331 = vmatprep.subr.bf16.mxu0 0
    %332 = vmatpush1.bf16.msra.mxu0 0
    %333 = vmatprep.subr.bf16.mxu0 0
    %334 = vmatpush1.bf16.msra.mxu0 0
    %335 = vmatprep.mubr.bf16.mxu0 0
    %336 = vmatmul.mubr.bf16.gmra.mrb[0].mxu0 %v276
    %v337 = vpop.f32.mrb[0].mxu0
    %v338 = vadd.f32 %v258, %v337
    %v339 = vpop.f32.mrb[0].mxu0
    %v340 = vpop.f32.mrb[0].mxu0
    %v341 = vadd.f32 %v258, %v340
    %v342 = vpop.f32.mrb[0].mxu0
    %343 = vmatprep.mubr.bf16.mxu0 0
    %344 = vmatmul.mubr.bf16.gmra.mrb[0].mxu0 %v279
    %v345 = vpop.f32.mrb[0].mxu0
    %v346 = vadd.f32 %v258, %v345
    %v347 = vpop.f32.mrb[0].mxu0
    %v348 = vpop.f32.mrb[0].mxu0
    %v349 = vadd.f32 %v258, %v348
    %v350 = vpop.f32.mrb[0].mxu0
    %351 = vmatprep.mubr.bf16.mxu0 0
    %352 = vmatmul.mubr.bf16.gmra.mrb[0].mxu0 %v282
    %v353 = vpop.f32.mrb[0].mxu0
    %v354 = vadd.f32 %v258, %v353
    %v355 = vpop.f32.mrb[0].mxu0
    %v356 = vpop.f32.mrb[0].mxu0
    %v357 = vadd.f32 %v258, %v356
    %v358 = vpop.f32.mrb[0].mxu0
    %359 = vmatprep.mubr.bf16.mxu0 0
    %360 = vmatmul.mubr.bf16.gmra.mrb[0].mxu0 %v285
    %v361 = vpop.f32.mrb[0].mxu0
    %v362 = vadd.f32 %v258, %v361
    %v363 = vpop.f32.mrb[0].mxu0
    %v364 = vpop.f32.mrb[0].mxu0
    %v365 = vadd.f32 %v258, %v364
    %v366 = vpop.f32.mrb[0].mxu0
    %367 = vmatprep.mubr.bf16.mxu0 0
    %368 = vmatmul.mubr.bf16.gmra.mrb[0].mxu0 %v288
    %v369 = vpop.f32.mrb[0].mxu0
    %v370 = vadd.f32 %v258, %v369
    %v371 = vpop.f32.mrb[0].mxu0
    %v372 = vpop.f32.mrb[0].mxu0
    %v373 = vadd.f32 %v258, %v372
    %v374 = vpop.f32.mrb[0].mxu0
    %375 = vmatprep.mubr.bf16.mxu0 0
    %376 = vmatmul.mubr.bf16.gmra.mrb[0].mxu0 %v291
    %v377 = vpop.f32.mrb[0].mxu0
    %v378 = vadd.f32 %v258, %v377
    %v379 = vpop.f32.mrb[0].mxu0
    %v380 = vpop.f32.mrb[0].mxu0
    %v381 = vadd.f32 %v258, %v380
    %v382 = vpop.f32.mrb[0].mxu0
    %383 = vmatprep.mubr.bf16.mxu0 0
    %384 = vmatmul.mubr.bf16.gmra.mrb[0].mxu0 %v294
    %v385 = vpop.f32.mrb[0].mxu0
    %v386 = vadd.f32 %v258, %v385
    %v387 = vpop.f32.mrb[0].mxu0
    %v388 = vpop.f32.mrb[0].mxu0
    %v389 = vadd.f32 %v258, %v388
    %v390 = vpop.f32.mrb[0].mxu0
    %391 = vmatprep.mubr.bf16.mxu0 0
    %392 = vmatmul.mubr.bf16.gmra.mrb[0].mxu0 %v297
    %v393 = vpop.f32.mrb[0].mxu0
    %v394 = vadd.f32 %v258, %v393
    %v395 = vpop.f32.mrb[0].mxu0
    %v396 = vpop.f32.mrb[0].mxu0
    %v397 = vadd.f32 %v258, %v396
    %v398 = vpop.f32.mrb[0].mxu0
    %399 = vdwg.mxu0
    %vm400 = vcmask 31744
    %401 = vst.msk [vmem:[%s5] sm:$0xff] %vm400, %v338
    %402 = vst.msk [vmem:[%s5 + $0x8] sm:$0xff] %vm400, %v341
    %403 = vst.msk [vmem:[%s5 + $0x10] sm:$0xff] %vm400, %v346
    %404 = vst.msk [vmem:[%s5 + $0x18] sm:$0xff] %vm400, %v349
    %405 = vst.msk [vmem:[%s5 + $0x20] sm:$0xff] %vm400, %v354
    %406 = vst.msk [vmem:[%s5 + $0x28] sm:$0xff] %vm400, %v357
    %407 = vst.msk [vmem:[%s5 + $0x30] sm:$0xff] %vm400, %v362
    %408 = vst.msk [vmem:[%s5 + $0x38] sm:$0xff] %vm400, %v365
    %409 = vst.msk [vmem:[%s5 + $0x40] sm:$0xff] %vm400, %v370
    %410 = vst.msk [vmem:[%s5 + $0x48] sm:$0xff] %vm400, %v373
    %411 = vst.msk [vmem:[%s5 + $0x50] sm:$0xff] %vm400, %v378
    %412 = vst.msk [vmem:[%s5 + $0x58] sm:$0xff] %vm400, %v381
    %413 = vst.msk [vmem:[%s5 + $0x60] sm:$0xff] %vm400, %v386
    %414 = vst.msk [vmem:[%s5 + $0x68] sm:$0xff] %vm400, %v389
    %415 = vst.msk [vmem:[%s5 + $0x70] sm:$0xff] %vm400, %v394
    %416 = vst.msk [vmem:[%s5 + $0x78] sm:$0xff] %vm400, %v397
    // Predicated region
    $region26: #{tpu_custom_call.1} parent=1 // pred_check
      _
    $region27: #{tpu_custom_call.1} parent=1 // pred_check_branch
      %418 = sbr.rel (0) target = $region29
    $region28: #{tpu_custom_call.1} parent=1 // pred_region
      _
    $region29: #{tpu_custom_call.1} parent=1 // pred_fallthru
      _
    // Predicated region
    $region30: #{tpu_custom_call.1} parent=1 // pred_check
      _
    $region31: #{tpu_custom_call.1} parent=1 // pred_check_branch
      %420 = sbr.rel (0) target = $region33
    $region32: #{tpu_custom_call.1} parent=1 // pred_region
      _
    $region33: #{tpu_custom_call.1} parent=1 // pred_fallthru
      _
    %421 = vsyncpa [#allocation4], 1

</llo_original>
